<compile_context>
chip_gen: v7x
topology: tpu7x:2x2x1
jax: 0.10.0
libtpu: 0.0.40
codegen_flags: <defaults>
</compile_context>

<pallas_src>
import functools

import jax
import jax.numpy as jnp
from jax import lax
from jax.experimental import pallas as pl
from jax.experimental.pallas import tpu as pltpu


# ---------------------------------------------------------------------------
# Kernels
# ---------------------------------------------------------------------------

def _gconv_acc_kernel(wT_ref, xT_ref, adj_ref, oT_ref, acc_ref, *, apply_relu):
    """out^T[:, i] = act( sum_k (W^T @ x^T[:, k]) contracted with adj[i, k] ).

    Scratch-accumulator variant: supports a final activation and a non-f32
    output dtype (hidden1 layer).
    """
    k = pl.program_id(1)

    @pl.when(k == 0)
    def _():
        acc_ref[...] = jnp.zeros_like(acc_ref)

    # Fused feature transform for this k tile: (H, tk) = (H, F) @ (F, tk).
    s_kT = jnp.dot(wT_ref[...], xT_ref[...],
                   preferred_element_type=jnp.float32)
    # (H, tm) += (H, tk) x (tm, tk) contracted over tk  (no explicit transpose;
    # does NOT assume adj is symmetric).
    acc_ref[...] += lax.dot_general(
        s_kT.astype(adj_ref.dtype), adj_ref[...],
        dimension_numbers=(((1,), (1,)), ((), ())),
        preferred_element_type=jnp.float32)

    @pl.when(k == pl.num_programs(1) - 1)
    def _():
        r = acc_ref[...]
        if apply_relu:
            r = jnp.maximum(r, 0.0)
        oT_ref[...] = r.astype(oT_ref.dtype)


def _gconv_direct_kernel(wT_ref, xT_ref, adj_ref, oT_ref):
    """Same as above, identity activation, f32 output: accumulate directly
    into the (resident-over-k) output block, no scratch."""
    k = pl.program_id(1)

    @pl.when(k == 0)
    def _():
        oT_ref[...] = jnp.zeros_like(oT_ref)

    s_kT = jnp.dot(wT_ref[...], xT_ref[...],
                   preferred_element_type=jnp.float32)
    oT_ref[...] += lax.dot_general(
        s_kT.astype(adj_ref.dtype), adj_ref[...],
        dimension_numbers=(((1,), (1,)), ((), ())),
        preferred_element_type=jnp.float32)


def _gram_kernel(zi_ref, zj_ref, o_ref):
    """adj_rec[i, j] = z[i] @ z[j]^T via a (1,1)-contraction (lane-dense out)."""
    o_ref[...] = lax.dot_general(
        zi_ref[...], zj_ref[...],
        dimension_numbers=(((1,), (1,)), ((), ())),
        preferred_element_type=jnp.float32).astype(o_ref.dtype)


# ---------------------------------------------------------------------------
# pallas_call wrappers
# ---------------------------------------------------------------------------

def _round_up(x, m):
    return ((x + m - 1) // m) * m


def _pick_tile(n, target):
    """Tile (multiple of 128) <= target, capped at ceil(n/2) rounded up so the
    parallel grid axis gets >= 2 steps whenever n allows it."""
    target = max(128, (target // 128) * 128)
    half = _round_up(max(1, -(-n // 2)), 128)
    return min(target, half)


def _graph_conv_T(wT, xT, adj, *, tm, tk, apply_relu, out_dtype,
                  vmem_limit_bytes=None):
    """Computes (act(adj @ (x @ W)))^T with shape (H, n)."""
    h, f = wT.shape
    n = adj.shape[0]
    assert adj.shape == (n, n)
    assert xT.shape == (f, n)
    assert n % tm == 0 and n % tk == 0

    in_specs = [
        pl.BlockSpec((h, f), lambda i, k: (0, 0)),      # weight, VMEM-resident
        pl.BlockSpec((f, tk), lambda i, k: (0, k)),     # x^T column tile
        pl.BlockSpec((tm, tk), lambda i, k: (i, k)),    # adj tile (bf16/f32)
    ]
    out_specs = pl.BlockSpec((h, tm), lambda i, k: (0, i))   # lane-dense out^T
    params = pltpu.CompilerParams(
        dimension_semantics=("parallel", "arbitrary"),
        vmem_limit_bytes=vmem_limit_bytes)
    grid = (n // tm, n // tk)                                # reduction last

    if out_dtype == jnp.float32 and not apply_relu:
        return pl.pallas_call(
            _gconv_direct_kernel,
            out_shape=jax.ShapeDtypeStruct((h, n), out_dtype),
            grid=grid, in_specs=in_specs, out_specs=out_specs,
            compiler_params=params,
        )(wT, xT, adj)

    return pl.pallas_call(
        functools.partial(_gconv_acc_kernel, apply_relu=apply_relu),
        out_shape=jax.ShapeDtypeStruct((h, n), out_dtype),
        grid=grid, in_specs=in_specs, out_specs=out_specs,
        scratch_shapes=[pltpu.VMEM((h, tm), jnp.float32)],
        compiler_params=params,
    )(wT, xT, adj)


def _gram(z, *, ti, tj, out_dtype, vmem_limit_bytes=None):
    n, h = z.shape
    assert n % ti == 0 and n % tj == 0
    return pl.pallas_call(
        _gram_kernel,
        out_shape=jax.ShapeDtypeStruct((n, n), out_dtype),
        grid=(n // ti, n // tj),
        in_specs=[pl.BlockSpec((ti, h), lambda i, j: (i, 0)),
                  pl.BlockSpec((tj, h), lambda i, j: (j, 0))],
        out_specs=pl.BlockSpec((ti, tj), lambda i, j: (i, j)),   # lane-dense
        compiler_params=pltpu.CompilerParams(
            dimension_semantics=("parallel", "parallel"),
            vmem_limit_bytes=vmem_limit_bytes),
    )(z, z)


def gcn_model_vae_forward(x, adj, w1, w2, w3, *,
                          tile_target=512,
                          compute_dtype=jnp.bfloat16,
                          vmem_limit_bytes=None):
    """Eval-mode GCNModelVAE forward. Returns (adj_rec, mu, logvar, z).

    compute_dtype: dtype of the HBM-dominant tensors (adj, x, hidden1,
    adj_rec).  MXU accumulation and mu/logvar stay float32.  Use
    compute_dtype=jnp.float32 for the reference-exact path.
    tile_target: 512 is safe for all generations without a VMEM override;
    raise to 1024+ (and set vmem_limit_bytes on v5e) for bigger graphs.
    """
    n, f_in = x.shape
    h1 = w1.shape[1]
    h2 = w2.shape[1]
    assert adj.shape == (n, n)
    assert w1.shape == (f_in, h1)
    assert w2.shape == (h1, h2)
    assert w3.shape == (h1, h2)

    tile = _pick_tile(n, tile_target)
    n_pad = _round_up(n, tile)
    pad = n_pad - n

    # Zero-pad nodes (padded adj rows/cols and x rows are 0 -> padded outputs
    # are exactly 0 and are sliced away below), cast HBM-heavy tensors.
    adj_p = jnp.pad(adj, ((0, pad), (0, pad))).astype(compute_dtype)
    xT_p = jnp.pad(x, ((0, pad), (0, 0))).T.astype(compute_dtype)   # (F, n_pad)

    w1T = w1.T.astype(compute_dtype)                                # (H1, F)
    w23T = jnp.concatenate([w2, w3], axis=1).T.astype(compute_dtype)  # (2H2, H1)

    # Layer 1: hidden1^T = relu(adj @ (x @ W1))^T        -> (H1, n_pad)
    hidden1T = _graph_conv_T(w1T, xT_p, adj_p, tm=tile, tk=tile,
                             apply_relu=True, out_dtype=compute_dtype,
                             vmem_limit_bytes=vmem_limit_bytes)

    # Fused heads: [mu | logvar]^T = (adj @ (hidden1 @ [W2 | W3]))^T, f32.
    out23T = _graph_conv_T(w23T, hidden1T, adj_p, tm=tile, tk=tile,
                           apply_relu=False, out_dtype=jnp.float32,
                           vmem_limit_bytes=vmem_limit_bytes)

    zT_pad = out23T[:h2]                  # (H2, n_pad), f32
    mu = zT_pad[:, :n].T                  # (n, H2)
    logvar = out23T[h2:, :n].T            # (n, H2)
    z = mu                                # eval-mode reparameterize

    # InnerProductDecoder (act = identity): adj_rec = z @ z.T
    z_pad = zT_pad.T                      # (n_pad, H2), padded rows are zero
    adj_rec = _gram(z_pad, ti=tile, tj=tile, out_dtype=compute_dtype,
                    vmem_limit_bytes=vmem_limit_bytes)[:n, :n]

    return adj_rec, mu, logvar, z


# ---------------------------------------------------------------------------
# Reference / demo
# ---------------------------------------------------------------------------

def _glorot(key, shape):
    fan_in, fan_out = shape
    limit = jnp.sqrt(6.0 / (fan_in + fan_out))
    return jax.random.uniform(key, shape, jnp.float32, -limit, limit)


def _reference(x, adj, w1, w2, w3):
    hidden1 = jnp.maximum(adj @ (x @ w1), 0.0)
    mu = adj @ (hidden1 @ w2)
    logvar = adj @ (hidden1 @ w3)
    z = mu
    return z @ z.T, mu, logvar, z


def _max_abs_err(a, b):
    return float(jnp.max(jnp.abs(a.astype(jnp.float32) - b)))


if __name__ == "__main__":
    key = jax.random.PRNGKey(0)
    k_x, k_a, k_w1, k_w2, k_w3 = jax.random.split(key, 5)

    # Small graph, deliberately not 128-divisible to exercise the padding path.
    N, F_IN, H1, H2 = 500, 64, 32, 16

    x = jax.random.normal(k_x, (N, F_IN), jnp.float32)

    # Symmetric adjacency with self loops, symmetric normalization D^-1/2 A D^-1/2.
    a = (jax.random.uniform(k_a, (N, N)) > 0.8).astype(jnp.float32)
    a = jnp.maximum(a, a.T) + jnp.eye(N, dtype=jnp.float32)
    deg = jnp.sum(a, axis=1, keepdims=True)
    adj = a / jnp.sqrt(deg) / jnp.sqrt(deg.T)

    w1 = _glorot(k_w1, (F_IN, H1))
    w2 = _glorot(k_w2, (H1, H2))
    w3 = _glorot(k_w3, (H1, H2))

    r_adj, r_mu, r_logvar, r_z = _reference(x, adj, w1, w2, w3)

    # 1) f32 path: reference-exact (tile_target=256 -> padded N=512, 2x2 grid).
    adj_rec, mu, logvar, z = gcn_model_vae_forward(
        x, adj, w1, w2, w3, tile_target=256, compute_dtype=jnp.float32)
    jax.block_until_ready((adj_rec, mu, logvar, z))
    assert adj_rec.shape == (N, N) and mu.shape == (N, H2)
    assert logvar.shape == (N, H2) and z.shape == (N, H2)
    assert jnp.allclose(adj_rec, r_adj, atol=1e-4, rtol=1e-4)
    assert jnp.allclose(mu, r_mu, atol=1e-4, rtol=1e-4)
    assert jnp.allclose(logvar, r_logvar, atol=1e-4, rtol=1e-4)
    assert jnp.allclose(z, r_z, atol=1e-4, rtol=1e-4)

    # 2) Default bf16 path (HBM-dominant tensors in bf16, f32 accumulation):
    #    sanity check against the reference with bf16-level tolerances.
    adj_rec_b, mu_b, logvar_b, z_b = gcn_model_vae_forward(
        x, adj, w1, w2, w3, tile_target=256)
    jax.block_until_ready((adj_rec_b, mu_b, logvar_b, z_b))
    assert bool(jnp.all(jnp.isfinite(adj_rec_b.astype(jnp.float32))))
    assert _max_abs_err(adj_rec_b, r_adj) <= 5e-2 * (float(jnp.max(jnp.abs(r_adj))) + 1.0)
    assert _max_abs_err(mu_b, r_mu) <= 5e-2 * (float(jnp.max(jnp.abs(r_mu))) + 1.0)
    assert _max_abs_err(logvar_b, r_logvar) <= 5e-2 * (float(jnp.max(jnp.abs(r_logvar))) + 1.0)

    print("KERNEL_OK")
</pallas_src>

<mosaic_0001>
module attributes {stable_mosaic.version = 11 : i64} {
  func.func @_gconv_acc_kernel(%arg0: i32, %arg1: i32, %arg2: memref<32x64xf32, #tpu.memory_space<vmem>>, %arg3: memref<64x256xf32, #tpu.memory_space<vmem>>, %arg4: memref<256x256xf32, #tpu.memory_space<vmem>>, %arg5: memref<32x256xf32, #tpu.memory_space<vmem>>, %arg6: memref<32x256xf32, #tpu.memory_space<vmem>>) attributes {dimension_semantics = [#tpu.dimension_semantics<parallel>, #tpu.dimension_semantics<arbitrary>], iteration_bounds = array<i64: 2, 2>, scalar_prefetch = 0 : i64, scratch_operands = 1 : i64, tpu.core_type = #tpu.core_type<tc>, window_params = [{pipeline_mode = #tpu.pipeline_mode<synchronous>, transform_indices = @transform_0, window_bounds = array<i64: 32, 64>}, {transform_indices = @transform_1, window_bounds = array<i64: 64, 256>}, {transform_indices = @transform_2, window_bounds = array<i64: 256, 256>}, {transform_indices = @transform_3, window_bounds = array<i64: 32, 256>}]} {
    %c0_i32 = arith.constant 0 : i32
    %0 = arith.cmpi eq, %arg1, %c0_i32 : i32
    %1 = arith.extui %0 : i1 to i32
    %c0_i32_0 = arith.constant 0 : i32
    %2 = arith.cmpi ne, %1, %c0_i32_0 : i32
    scf.if %2 {
      %cst_12 = arith.constant 0.000000e+00 : f32
      %14 = vector.broadcast %cst_12 : f32 to vector<32x256xf32>
      %c0_13 = arith.constant 0 : index
      %c0_14 = arith.constant 0 : index
      %15 = vector.load %arg6[%c0_13, %c0_14] : memref<32x256xf32, #tpu.memory_space<vmem>>, vector<32x256xf32>
      tpu.vector_store %arg6[%c0_13, %c0_14], %14 {strides = array<i32>} : memref<32x256xf32, #tpu.memory_space<vmem>>, vector<32x256xf32>,
    } else {
    }
    %c0 = arith.constant 0 : index
    %c0_1 = arith.constant 0 : index
    %3 = vector.load %arg2[%c0, %c0_1] : memref<32x64xf32, #tpu.memory_space<vmem>>, vector<32x64xf32>
    %c0_2 = arith.constant 0 : index
    %c0_3 = arith.constant 0 : index
    %4 = vector.load %arg3[%c0_2, %c0_3] : memref<64x256xf32, #tpu.memory_space<vmem>>, vector<64x256xf32>
    %cst = arith.constant dense<0.000000e+00> : vector<32x256xf32>
    %5 = tpu.matmul %3, %4, %cst {dimension_numbers = #tpu.dot_dimension_numbers<[1], [0], [0], [1], [0, 0, 1, 1], [], []>} : vector<32x64xf32>, vector<64x256xf32>, vector<32x256xf32> -> vector<32x256xf32>
    %c0_4 = arith.constant 0 : index
    %c0_5 = arith.constant 0 : index
    %6 = vector.load %arg6[%c0_4, %c0_5] : memref<32x256xf32, #tpu.memory_space<vmem>>, vector<32x256xf32>
    %c0_6 = arith.constant 0 : index
    %c0_7 = arith.constant 0 : index
    %7 = vector.load %arg4[%c0_6, %c0_7] : memref<256x256xf32, #tpu.memory_space<vmem>>, vector<256x256xf32>
    %cst_8 = arith.constant dense<0.000000e+00> : vector<32x256xf32>
    %8 = tpu.matmul %5, %7, %cst_8 {dimension_numbers = #tpu.dot_dimension_numbers<[1], [1], [0], [0], [0, 0, 1, 0], [], []>} : vector<32x256xf32>, vector<256x256xf32>, vector<32x256xf32> -> vector<32x256xf32>
    %9 = arith.addf %6, %8 : vector<32x256xf32>
    %c0_9 = arith.constant 0 : index
    %c0_10 = arith.constant 0 : index
    %10 = vector.load %arg6[%c0_9, %c0_10] : memref<32x256xf32, #tpu.memory_space<vmem>>, vector<32x256xf32>
    tpu.vector_store %arg6[%c0_9, %c0_10], %9 {strides = array<i32>} : memref<32x256xf32, #tpu.memory_space<vmem>>, vector<32x256xf32>,
    %c1_i32 = arith.constant 1 : i32
    %11 = arith.cmpi eq, %arg1, %c1_i32 : i32
    %12 = arith.extui %11 : i1 to i32
    %c0_i32_11 = arith.constant 0 : i32
    %13 = arith.cmpi ne, %12, %c0_i32_11 : i32
    scf.if %13 {
      %c0_12 = arith.constant 0 : index
      %c0_13 = arith.constant 0 : index
      %14 = vector.load %arg6[%c0_12, %c0_13] : memref<32x256xf32, #tpu.memory_space<vmem>>, vector<32x256xf32>
      %cst_14 = arith.constant 0.000000e+00 : f32
      %15 = vector.broadcast %cst_14 : f32 to vector<32x256xf32>
      %16 = arith.maximumf %14, %15 : vector<32x256xf32>
      %c0_15 = arith.constant 0 : index
      %c0_16 = arith.constant 0 : index
      %17 = vector.load %arg5[%c0_15, %c0_16] : memref<32x256xf32, #tpu.memory_space<vmem>>, vector<32x256xf32>
      tpu.vector_store %arg5[%c0_15, %c0_16], %16 {strides = array<i32>} : memref<32x256xf32, #tpu.memory_space<vmem>>, vector<32x256xf32>,
    } else {
    }
    return
  }
  func.func @transform_0(%arg0: i32, %arg1: i32) -> (i32, i32) {
    %c0_i32 = arith.constant 0 : i32
    %c0_i32_0 = arith.constant 0 : i32
    %c0_i32_1 = arith.constant 0 : i32
    return %c0_i32, %c0_i32_0 : i32, i32
  }
  func.func @transform_1(%arg0: i32, %arg1: i32) -> (i32, i32) {
    %c0_i32 = arith.constant 0 : i32
    %c0_i32_0 = arith.constant 0 : i32
    return %c0_i32, %arg1 : i32, i32
  }
  func.func @transform_2(%arg0: i32, %arg1: i32) -> (i32, i32) {
    %c0_i32 = arith.constant 0 : i32
    return %arg0, %arg1 : i32, i32
  }
  func.func @transform_3(%arg0: i32, %arg1: i32) -> (i32, i32) {
    %c0_i32 = arith.constant 0 : i32
    %c0_i32_0 = arith.constant 0 : i32
    return %c0_i32, %arg0 : i32, i32
  }
}

</mosaic_0001>

<llo_original>
// kernel: tpu_custom_call.1
$region0: #{tpu_custom_call.1}
  #allocation0 [shape = 'u32[]', space=smem, size = 0x4, offset = 0x4, fixed_abs, tag = 'smem constant byte address 0x4 - core index']
  #allocation1 [shape = 'u32[144,128]{1,0:T(1,128)}', space=vmem, size = 0x12000, scoped, tag = 'internal scratch']
  #allocation2 [shape = 'f32[32,256]{1,0:T(8,128)}', space=vmem, size = 0x8000, scoped, tag = 'scratch operand']
  %s0 = inlined_call_operand.hbm [shape: f32[32,64], index: 0, kind: input, shape index: {}]
  %s1 = inlined_call_operand.hbm [shape: f32[64,512], index: 1, kind: input, shape index: {}]
  %s2 = inlined_call_operand.hbm [shape: f32[512,512], index: 2, kind: input, shape index: {}]
  %s3 = inlined_call_operand.hbm [shape: f32[32,512], index: 3, kind: output, shape index: {}]
  %s4 = sld [smem:[#allocation0]]
  $region65: #{tpu_custom_call.1} parent=0
    _
  %s6 = ssub.s32 1, %s4
  %s7 = scalar_select 0, %s6, %s4
  $region1: #{tpu_custom_call.1} parent=0
    #allocation3 [shape = 'u8[16384]{0}', space=vmem, size = 0x4000, scoped, tag = 'input window, operand 0, single buffered']
    #allocation4 [shape = 's32[2]{0}', space=sflag, size = 0x8, scoped, tag = 'scoped memory for tpu_custom_call.1']
    #allocation5 [shape = 's32[2]{0}', space=sflag, size = 0x8, scoped, tag = 'scoped memory for tpu_custom_call.1']
    #allocation6 [shape = 'u8[131072]{0}', space=vmem, size = 0x20000, scoped, tag = 'input window, operand 1']
    #allocation7 [shape = 's32[2]{0}', space=sflag, size = 0x8, scoped, tag = 'scoped memory for tpu_custom_call.1']
    #allocation8 [shape = 'u8[524288]{0}', space=vmem, size = 0x80000, scoped, tag = 'input window, operand 2']
    #allocation9 [shape = 'u8[65536]{0}', space=vmem, size = 0x10000, scoped, tag = 'output window, operand 0']
    %8 = vsyncpa [#allocation4], 0
    %9 = vsyncpa [#allocation7], 0
    %s10 = scalar_lea.sflag [#allocation7], 1
    %11 = vsyncpa %s10, 0
    %12 = vsyncpa [#allocation5], 0
    %s13 = scalar_lea.sflag [#allocation5], 1
    %14 = vsyncpa %s13, 0
    loop: start=0, step=1, limit=6
    $region2: #{tpu_custom_call.1} parent=1 // loop_pre_header
      _
    $region3: #{tpu_custom_call.1} parent=1 // loop_header
      %s16 = sphi 0, %s20
      %p17 = scmp.ge.s32.totalorder %s16, 6
      %s23 = sphi 0, %s35
      %s24 = sphi 0, %s31
      %s25 = sphi 0, %s23
      %s26 = sphi 0, %s24
      %s27 = sphi 0, %s25
      %s28 = sphi 0, %s26
      %s36 = sphi 0, %s36
      %s38 = sphi 0, %s36
      %s39 = sphi 0, %s38
      %s53 = sphi 0, %s39
      %s59 = sphi 0, %s61
      %s62 = sphi 0, %s59
      %s63 = sphi 0, %s62
      %s79 = sphi 0, %s63
      %s87 = sphi 0, %s89
      %s90 = sphi 0, %s87
      %s91 = sphi 0, %s90
      %s107 = sphi 0, %s91
      %s113 = sphi 0, %s115
      %s116 = sphi 0, %s113
      %s117 = sphi 0, %s116
      %s133 = sphi 0, %s117
    $region4: #{tpu_custom_call.1} parent=1 // loop_header_branch
      %19 = sbr.rel (%p17) target = $region8
    $region5: #{tpu_custom_call.1} parent=1 // loop_body
      %s21 = ssub.s32 %s16, 1
      %s22 = ssub.s32 %s16, 2
      %s29 = sadd.s32 1, %s24
      %p30 = scmp.ge.s32.totalorder %s29, 2
      %s31 = scalar_select %p30, 0, %s29
      %s32 = sadd.s32 1, %s23
      %s33 = scalar_select %p30, %s32, %s23
      %p34 = scmp.ge.s32.totalorder %s33, 2
      %s35 = scalar_select %p34, 0, %s33
      %s37 = sadd.s32 %s36, 1
      %p40 = scmp.eq.s32.totalorder %s16, 3
      %p41 = scmp.ne.s32.totalorder %s36, %s38
      %p42 = scmp.eq.s32.totalorder %s16, 0
      %p43 = por %p41, %p42
      %p44 = scmp.ne.s32.totalorder %s36, %s38
      %p45 = scmp.eq.s32.totalorder %s21, 3
      %p46 = por %p44, %p45
      %p47 = scmp.ne.s32.totalorder %s38, %s39
      %p48 = scmp.eq.s32.totalorder %s21, 0
      %p49 = por %p47, %p48
      %p50 = scmp.ne.s32.totalorder %s38, %s39
      %p51 = scmp.eq.s32.totalorder %s22, 3
      %p52 = por %p50, %p51
      %p54 = scmp.ne.s32.totalorder %s39, %s53
      %p55 = scmp.eq.s32.totalorder %s22, 0
      %p56 = por %p54, %p55
      %s57 = ssub.s32 %s24, %s31
      %p58 = scmp.eq.s32.totalorder %s57, 0
      %s60 = sadd.s32 %s59, 1
      %s61 = scalar_select %p58, %s59, %s60
      %p64 = pneg %p58
      %p65 = scmp.eq.s32.totalorder %s16, 3
      %p66 = por %p64, %p65
      %p67 = scmp.ne.s32.totalorder %s59, %s62
      %p68 = scmp.eq.s32.totalorder %s16, 0
      %p69 = por %p67, %p68
      %p70 = scmp.ne.s32.totalorder %s59, %s62
      %p71 = scmp.eq.s32.totalorder %s21, 3
      %p72 = por %p70, %p71
      %p73 = scmp.ne.s32.totalorder %s62, %s63
      %p74 = scmp.eq.s32.totalorder %s21, 0
      %p75 = por %p73, %p74
      %p76 = scmp.ne.s32.totalorder %s62, %s63
      %p77 = scmp.eq.s32.totalorder %s22, 3
      %p78 = por %p76, %p77
      %p80 = scmp.ne.s32.totalorder %s63, %s79
      %p81 = scmp.eq.s32.totalorder %s22, 0
      %p82 = por %p80, %p81
      %s83 = ssub.s32 %s23, %s35
      %s84 = ssub.s32 %s24, %s31
      %s85 = sor.u32 %s83, %s84
      %p86 = scmp.eq.s32.totalorder %s85, 0
      %s88 = sadd.s32 %s87, 1
      %s89 = scalar_select %p86, %s87, %s88
      %p92 = pneg %p86
      %p93 = scmp.eq.s32.totalorder %s16, 3
      %p94 = por %p92, %p93
      %p95 = scmp.ne.s32.totalorder %s87, %s90
      %p96 = scmp.eq.s32.totalorder %s16, 0
      %p97 = por %p95, %p96
      %p98 = scmp.ne.s32.totalorder %s87, %s90
      %p99 = scmp.eq.s32.totalorder %s21, 3
      %p100 = por %p98, %p99
      %p101 = scmp.ne.s32.totalorder %s90, %s91
      %p102 = scmp.eq.s32.totalorder %s21, 0
      %p103 = por %p101, %p102
      %p104 = scmp.ne.s32.totalorder %s90, %s91
      %p105 = scmp.eq.s32.totalorder %s22, 3
      %p106 = por %p104, %p105
      %p108 = scmp.ne.s32.totalorder %s91, %s107
      %p109 = scmp.eq.s32.totalorder %s22, 0
      %p110 = por %p108, %p109
      %s111 = ssub.s32 %s23, %s35
      %p112 = scmp.eq.s32.totalorder %s111, 0
      %s114 = sadd.s32 %s113, 1
      %s115 = scalar_select %p112, %s113, %s114
      %p118 = pneg %p112
      %p119 = scmp.eq.s32.totalorder %s16, 3
      %p120 = por %p118, %p119
      %p121 = scmp.ne.s32.totalorder %s113, %s116
      %p122 = scmp.eq.s32.totalorder %s16, 0
      %p123 = por %p121, %p122
      %p124 = scmp.ne.s32.totalorder %s113, %s116
      %p125 = scmp.eq.s32.totalorder %s21, 3
      %p126 = por %p124, %p125
      %p127 = scmp.ne.s32.totalorder %s116, %s117
      %p128 = scmp.eq.s32.totalorder %s21, 0
      %p129 = por %p127, %p128
      %p130 = scmp.ne.s32.totalorder %s116, %s117
      %p131 = scmp.eq.s32.totalorder %s22, 3
      %p132 = por %p130, %p131
      %p134 = scmp.ne.s32.totalorder %s117, %s133
      %p135 = scmp.eq.s32.totalorder %s22, 0
      %p136 = por %p134, %p135
      %p137 = scmp.le.s32.totalorder 1, %s16
      %p138 = scmp.lt.s32.totalorder %s16, 5
      %p139 = pnand %p137, %p138
      %p140 = pneg %p139
      // Predicated region
      $region9: #{tpu_custom_call.1} parent=5 // pred_check
        _
      $region10: #{tpu_custom_call.1} parent=5 // pred_check_branch
        %142 = sbr.rel (%p139) target = $region12
      $region11: #{tpu_custom_call.1} parent=5 // pred_region
        %s143 = ssub.s32 %s16, 1
        // Predicated region
        $region13: #{tpu_custom_call.1} parent=11 // pred_check
          %p144 = pneg %p49
        $region14: #{tpu_custom_call.1} parent=11 // pred_check_branch
          %146 = sbr.rel (%p144) target = $region16
        $region15: #{tpu_custom_call.1} parent=11 // pred_region
          %s148 = ssub.s32 512, 512
          %149 = vsyncadd [#allocation4], %s148
          %s150 = sshll.u32 [#allocation3], 4
          %s151 = int_to_ptr.vmem [resolvable:$true] %s150
          %156 = dma.hbm_to_vmem [thread:$0]  %s0, 512, %s151, [#allocation4], 128, 128, 8
        $region16: #{tpu_custom_call.1} parent=11 // pred_fallthru
          _
      $region12: #{tpu_custom_call.1} parent=5 // pred_fallthru
        _
      %p157 = scmp.lt.s32.totalorder %s16, 4
      // Predicated region
      $region17: #{tpu_custom_call.1} parent=5 // pred_check
        %p158 = pneg %p157
      $region18: #{tpu_custom_call.1} parent=5 // pred_check_branch
        %160 = sbr.rel (%p158) target = $region20
      $region19: #{tpu_custom_call.1} parent=5 // pred_region
        // Predicated region
        $region21: #{tpu_custom_call.1} parent=19 // pred_check
          %p161 = pneg %p69
        $region22: #{tpu_custom_call.1} parent=19 // pred_check_branch
          %163 = sbr.rel (%p161) target = $region24
        $region23: #{tpu_custom_call.1} parent=19 // pred_region
          %s164 = sand.u32 %s16, 1
          %s165 = scalar_lea.sflag [#allocation7], %s164
          %s166 = sand.u32 %s59, 1
          %s167 = smul.addr %s166, 128
          %s168 = scalar_lea.vmem [#allocation6], %s167
          %s169 = smul.u32 2, %s24
          %s171 = ssub.s32 2048, 2048
          %172 = vsyncadd %s165, %s171
          %s173 = smul.addr %s169, 128
          %s174 = scalar_lea.hbm %s1, %s173
          %s175 = sshll.u32 %s168, 4
          %s176 = int_to_ptr.vmem [resolvable:$true] %s175
          %181 = dma.hbm_to_vmem [thread:$0]  %s174, 2048, %s176, %s165, 512, 256, 16
        $region24: #{tpu_custom_call.1} parent=19 // pred_fallthru
          _
        // Predicated region
        $region25: #{tpu_custom_call.1} parent=19 // pred_check
          %p182 = pneg %p97
        $region26: #{tpu_custom_call.1} parent=19 // pred_check_branch
          %184 = sbr.rel (%p182) target = $region28
        $region27: #{tpu_custom_call.1} parent=19 // pred_region
          %s185 = sand.u32 %s16, 1
          %s186 = scalar_lea.sflag [#allocation7], %s185
          %s187 = sand.u32 %s87, 1
          %s188 = smul.addr %s187, 512
          %s189 = scalar_lea.vmem [#allocation8], %s188
          %s190 = smul.u32 32, %s23
          %s191 = smul.u32 2, %s24
          %s193 = ssub.s32 8192, 8192
          %194 = vsyncadd %s186, %s193
          %s195 = smul.addr %s190, 4
          %s196 = sadd.s32 %s191, %s195
          %s197 = smul.addr %s196, 128
          %s198 = scalar_lea.hbm %s2, %s197
          %s199 = sshll.u32 %s189, 4
          %s200 = int_to_ptr.vmem [resolvable:$true] %s199
          %205 = dma.hbm_to_vmem [thread:$0]  %s198, 8192, %s200, %s186, 512, 256, 16
        $region28: #{tpu_custom_call.1} parent=19 // pred_fallthru
          _
      $region20: #{tpu_custom_call.1} parent=5 // pred_fallthru
        _
      %p206 = scmp.le.s32.totalorder 1, %s16
      %p207 = scmp.lt.s32.totalorder %s16, 5
      %p208 = pnand %p206, %p207
      %p209 = pneg %p208
      // Predicated region
      $region29: #{tpu_custom_call.1} parent=5 // pred_check
        _
      $region30: #{tpu_custom_call.1} parent=5 // pred_check_branch
        %211 = sbr.rel (%p208) target = $region32
      $region31: #{tpu_custom_call.1} parent=5 // pred_region
        %s212 = ssub.s32 %s16, 1
        // Predicated region
        $region33: #{tpu_custom_call.1} parent=31 // pred_check
          %p213 = pneg %p49
        $region34: #{tpu_custom_call.1} parent=31 // pred_check_branch
          %215 = sbr.rel (%p213) target = $region36
        $region35: #{tpu_custom_call.1} parent=31 // pred_region
          %216 = dma.done [#allocation4], 512
        $region36: #{tpu_custom_call.1} parent=31 // pred_fallthru
          _
        %s217 = sand.u32 %s21, 1
        %s218 = scalar_lea.sflag [#allocation7], %s217
        %s219 = sand.u32 %s62, 1
        %s220 = smul.addr %s219, 128
        %s221 = scalar_lea.vmem [#allocation6], %s220
        // Predicated region
        $region37: #{tpu_custom_call.1} parent=31 // pred_check
          %p222 = pneg %p75
        $region38: #{tpu_custom_call.1} parent=31 // pred_check_branch
          %224 = sbr.rel (%p222) target = $region40
        $region39: #{tpu_custom_call.1} parent=31 // pred_region
          %225 = dma.done %s218, 2048
        $region40: #{tpu_custom_call.1} parent=31 // pred_fallthru
          _
        %s226 = sand.u32 %s21, 1
        %s227 = scalar_lea.sflag [#allocation7], %s226
        %s228 = sand.u32 %s90, 1
        %s229 = smul.addr %s228, 512
        %s230 = scalar_lea.vmem [#allocation8], %s229
        // Predicated region
        $region41: #{tpu_custom_call.1} parent=31 // pred_check
          %p231 = pneg %p103
        $region42: #{tpu_custom_call.1} parent=31 // pred_check_branch
          %233 = sbr.rel (%p231) target = $region44
        $region43: #{tpu_custom_call.1} parent=31 // pred_region
          %234 = dma.done %s227, 8192
        $region44: #{tpu_custom_call.1} parent=31 // pred_fallthru
          _
        %p235 = pneg %p49
        %p236 = pneg %p46
        %s237 = sand.u32 %s21, 1
        %s238 = scalar_lea.sflag [#allocation7], %s237
        %s239 = sand.u32 %s62, 1
        %s240 = smul.addr %s239, 128
        %s241 = scalar_lea.vmem [#allocation6], %s240
        %p242 = pneg %p75
        %p243 = pneg %p72
        %s244 = sand.u32 %s21, 1
        %s245 = scalar_lea.sflag [#allocation7], %s244
        %s246 = sand.u32 %s90, 1
        %s247 = smul.addr %s246, 512
        %s248 = scalar_lea.vmem [#allocation8], %s247
        %p249 = pneg %p103
        %p250 = pneg %p100
        %p251 = pneg %p129
        %p252 = pneg %p126
        %s253 = sand.u32 %s116, 1
        %s254 = scalar_lea.sflag [#allocation5], %s253
        %s255 = sand.u32 %s116, 1
        %s256 = smul.addr %s255, 64
        %s257 = scalar_lea.vmem [#allocation9], %s256
        %s258 = smul.u32 2, %s26
        %s259 = smul.u32 32, %s25
        %s260 = smul.u32 2, %s26
        %s261 = smul.u32 2, %s25
        %p262 = scmp.eq.s32.totalorder %s26, 0
        // Predicated region
        $region45: #{tpu_custom_call.1} parent=31 // pred_check
          %p263 = pneg %p262
        $region46: #{tpu_custom_call.1} parent=31 // pred_check_branch
          %265 = sbr.rel (%p263) target = $region48
        $region47: #{tpu_custom_call.1} parent=31 // pred_region
          %266 = vst [vmem:[#allocation2] sm:$0xff] 0.0
          %267 = vst [vmem:[#allocation2 + $0x8] sm:$0xff] 0.0
          %268 = vst [vmem:[#allocation2 + $0x10] sm:$0xff] 0.0
          %269 = vst [vmem:[#allocation2 + $0x18] sm:$0xff] 0.0
          %270 = vst [vmem:[#allocation2 + $0x20] sm:$0xff] 0.0
          %271 = vst [vmem:[#allocation2 + $0x28] sm:$0xff] 0.0
          %272 = vst [vmem:[#allocation2 + $0x30] sm:$0xff] 0.0
          %273 = vst [vmem:[#allocation2 + $0x38] sm:$0xff] 0.0
        $region48: #{tpu_custom_call.1} parent=31 // pred_fallthru
          _
        %v274 = vld [vmem:[#allocation3] sm:$0xff]
        %v275 = vld [vmem:[#allocation3 + $0x8] sm:$0xff]
        %v276 = vld [vmem:[#allocation3 + $0x10] sm:$0xff]
        %v277 = vld [vmem:[#allocation3 + $0x18] sm:$0xff]
        %v278 = vld [vmem:[%s221] sm:$0xff]
        %v279 = vld [vmem:[%s221 + $0x8] sm:$0xff]
        %v280 = vld [vmem:[%s221 + $0x10] sm:$0xff]
        %v281 = vld [vmem:[%s221 + $0x18] sm:$0xff]
        %v282 = vld [vmem:[%s221 + $0x20] sm:$0xff]
        %v283 = vld [vmem:[%s221 + $0x28] sm:$0xff]
        %v284 = vld [vmem:[%s221 + $0x30] sm:$0xff]
        %v285 = vld [vmem:[%s221 + $0x38] sm:$0xff]
        %v286 = vld [vmem:[%s221 + $0x40] sm:$0xff]
        %v287 = vld [vmem:[%s221 + $0x48] sm:$0xff]
        %v288 = vld [vmem:[%s221 + $0x50] sm:$0xff]
        %v289 = vld [vmem:[%s221 + $0x58] sm:$0xff]
        %v290 = vld [vmem:[%s221 + $0x60] sm:$0xff]
        %v291 = vld [vmem:[%s221 + $0x68] sm:$0xff]
        %v292 = vld [vmem:[%s221 + $0x70] sm:$0xff]
        %v293 = vld [vmem:[%s221 + $0x78] sm:$0xff]
        %vm294 = vcmask 523264
        %v296 = vsel %vm294, %v274, 0
        %v299 = vsel %vm294, %v275, 0
        %v302 = vsel %vm294, %v276, 0
        %v305 = vsel %vm294, %v277, 0
        %307 = vmatprep.subr.mxu0 %v279
        %308 = vmatpush1.msra.mxu0 %v278
        %309 = vmatprep.subr.mxu0 %v281
        %310 = vmatpush1.msra.mxu0 %v280
        %311 = vmatprep.subr.mxu0 %v283
        %312 = vmatpush1.msra.mxu0 %v282
        %313 = vmatprep.subr.mxu0 %v285
        %314 = vmatpush1.msra.mxu0 %v284
        %315 = vmatprep.subr.mxu0 %v287
        %316 = vmatpush1.msra.mxu0 %v286
        %317 = vmatprep.subr.mxu0 %v289
        %318 = vmatpush1.msra.mxu0 %v288
        %319 = vmatprep.subr.mxu0 %v291
        %320 = vmatpush1.msra.mxu0 %v290
        %321 = vmatprep.subr.mxu0 %v293
        %322 = vmatpush1.msra.mxu0 %v292
        %323 = vmatprep.subr.mxu0 0.0
        %324 = vmatpush1.msra.mxu0 0.0
        %325 = vmatprep.subr.mxu0 0.0
        %326 = vmatpush1.msra.mxu0 0.0
        %327 = vmatprep.subr.mxu0 0.0
        %328 = vmatpush1.msra.mxu0 0.0
        %329 = vmatprep.subr.mxu0 0.0
        %330 = vmatpush1.msra.mxu0 0.0
        %331 = vmatprep.subr.mxu0 0.0
        %332 = vmatpush1.msra.mxu0 0.0
        %333 = vmatprep.subr.mxu0 0.0
        %334 = vmatpush1.msra.mxu0 0.0
        %335 = vmatprep.subr.mxu0 0.0
        %336 = vmatpush1.msra.mxu0 0.0
        %337 = vmatprep.subr.mxu0 0.0
        %338 = vmatpush1.msra.mxu0 0.0
        %339 = vmatprep.subr.mxu0 0.0
        %340 = vmatpush1.msra.mxu0 0.0
        %341 = vmatprep.subr.mxu0 0.0
        %342 = vmatpush1.msra.mxu0 0.0
        %343 = vmatprep.subr.mxu0 0.0
        %344 = vmatpush1.msra.mxu0 0.0
        %345 = vmatprep.subr.mxu0 0.0
        %346 = vmatpush1.msra.mxu0 0.0
        %347 = vmatprep.subr.mxu0 0.0
        %348 = vmatpush1.msra.mxu0 0.0
        %349 = vmatprep.subr.mxu0 0.0
        %350 = vmatpush1.msra.mxu0 0.0
        %351 = vmatprep.subr.mxu0 0.0
        %352 = vmatpush1.msra.mxu0 0.0
        %353 = vmatprep.subr.mxu0 0.0
        %354 = vmatpush1.msra.mxu0 0.0
        %355 = vmatprep.subr.mxu0 0.0
        %356 = vmatpush1.msra.mxu0 0.0
        %357 = vmatprep.subr.mxu0 0.0
        %358 = vmatpush1.msra.mxu0 0.0
        %359 = vmatprep.subr.mxu0 0.0
        %360 = vmatpush1.msra.mxu0 0.0
        %361 = vmatprep.subr.mxu0 0.0
        %362 = vmatpush1.msra.mxu0 0.0
        %363 = vmatprep.subr.mxu0 0.0
        %364 = vmatpush1.msra.mxu0 0.0
        %365 = vmatprep.subr.mxu0 0.0
        %366 = vmatpush1.msra.mxu0 0.0
        %367 = vmatprep.subr.mxu0 0.0
        %368 = vmatpush1.msra.mxu0 0.0
        %369 = vmatprep.subr.mxu0 0.0
        %370 = vmatpush1.msra.mxu0 0.0
        %371 = vmatprep.mubr.f32.mxu0 0.0
        %372 = vmatmul.mubr.f32.gmra.mrb[0].mxu0 %v296
        %v373 = vpop.f32.mrb[0].mxu0
        %v374 = vadd.f32 0.0, %v373
        %v375 = vpop.f32.mrb[0].mxu0
        %v376 = vadd.f32 0.0, %v375
        %377 = vmatprep.mubr.f32.mxu0 0.0
        %378 = vmatmul.mubr.f32.gmra.mrb[0].mxu0 %v299
        %v379 = vpop.f32.mrb[0].mxu0
        %v380 = vadd.f32 0.0, %v379
        %v381 = vpop.f32.mrb[0].mxu0
        %v382 = vadd.f32 0.0, %v381
        %383 = vmatprep.mubr.f32.mxu0 0.0
        %384 = vmatmul.mubr.f32.gmra.mrb[0].mxu0 %v302
        %v385 = vpop.f32.mrb[0].mxu0
        %v386 = vadd.f32 0.0, %v385
        %v387 = vpop.f32.mrb[0].mxu0
        %v388 = vadd.f32 0.0, %v387
        %389 = vmatprep.mubr.f32.mxu0 0.0
        %390 = vmatmul.mubr.f32.gmra.mrb[0].mxu0 %v305
        %v391 = vpop.f32.mrb[0].mxu0
        %v392 = vadd.f32 0.0, %v391
        %v393 = vpop.f32.mrb[0].mxu0
        %v394 = vadd.f32 0.0, %v393
        %395 = vdwg.mxu0
        %v396 = vld [vmem:[#allocation2] sm:$0xff]
        %v397 = vld [vmem:[#allocation2 + $0x8] sm:$0xff]
        %v398 = vld [vmem:[#allocation2 + $0x10] sm:$0xff]
        %v399 = vld [vmem:[#allocation2 + $0x18] sm:$0xff]
        %v400 = vld [vmem:[#allocation2 + $0x20] sm:$0xff]
        %v401 = vld [vmem:[#allocation2 + $0x28] sm:$0xff]
        %v402 = vld [vmem:[#allocation2 + $0x30] sm:$0xff]
        %v403 = vld [vmem:[#allocation2 + $0x38] sm:$0xff]
        %v404 = vld [vmem:[%s230] sm:$0xff]
        %v405 = vld [vmem:[%s230 + $0x8] sm:$0xff]
        %v406 = vld [vmem:[%s230 + $0x10] sm:$0xff]
        %v407 = vld [vmem:[%s230 + $0x18] sm:$0xff]
        %v408 = vld [vmem:[%s230 + $0x20] sm:$0xff]
        %v409 = vld [vmem:[%s230 + $0x28] sm:$0xff]
        %v410 = vld [vmem:[%s230 + $0x30] sm:$0xff]
        %v411 = vld [vmem:[%s230 + $0x38] sm:$0xff]
        %v412 = vld [vmem:[%s230 + $0x40] sm:$0xff]
        %v413 = vld [vmem:[%s230 + $0x48] sm:$0xff]
        %v414 = vld [vmem:[%s230 + $0x50] sm:$0xff]
        %v415 = vld [vmem:[%s230 + $0x58] sm:$0xff]
        %v416 = vld [vmem:[%s230 + $0x60] sm:$0xff]
        %v417 = vld [vmem:[%s230 + $0x68] sm:$0xff]
        %v418 = vld [vmem:[%s230 + $0x70] sm:$0xff]
        %v419 = vld [vmem:[%s230 + $0x78] sm:$0xff]
        %v420 = vld [vmem:[%s230 + $0x80] sm:$0xff]
        %v421 = vld [vmem:[%s230 + $0x88] sm:$0xff]
        %v422 = vld [vmem:[%s230 + $0x90] sm:$0xff]
        %v423 = vld [vmem:[%s230 + $0x98] sm:$0xff]
        %v424 = vld [vmem:[%s230 + $0xa0] sm:$0xff]
        %v425 = vld [vmem:[%s230 + $0xa8] sm:$0xff]
        %v426 = vld [vmem:[%s230 + $0xb0] sm:$0xff]
        %v427 = vld [vmem:[%s230 + $0xb8] sm:$0xff]
        %v428 = vld [vmem:[%s230 + $0xc0] sm:$0xff]
        %v429 = vld [vmem:[%s230 + $0xc8] sm:$0xff]
        %v430 = vld [vmem:[%s230 + $0xd0] sm:$0xff]
        %v431 = vld [vmem:[%s230 + $0xd8] sm:$0xff]
        %v432 = vld [vmem:[%s230 + $0xe0] sm:$0xff]
        %v433 = vld [vmem:[%s230 + $0xe8] sm:$0xff]
        %v434 = vld [vmem:[%s230 + $0xf0] sm:$0xff]
        %v435 = vld [vmem:[%s230 + $0xf8] sm:$0xff]
        %v436 = vld [vmem:[%s230 + $0x100] sm:$0xff]
        %v437 = vld [vmem:[%s230 + $0x108] sm:$0xff]
        %v438 = vld [vmem:[%s230 + $0x110] sm:$0xff]
        %v439 = vld [vmem:[%s230 + $0x118] sm:$0xff]
        %v440 = vld [vmem:[%s230 + $0x120] sm:$0xff]
        %v441 = vld [vmem:[%s230 + $0x128] sm:$0xff]
        %v442 = vld [vmem:[%s230 + $0x130] sm:$0xff]
        %v443 = vld [vmem:[%s230 + $0x138] sm:$0xff]
        %v444 = vld [vmem:[%s230 + $0x140] sm:$0xff]
        %v445 = vld [vmem:[%s230 + $0x148] sm:$0xff]
        %v446 = vld [vmem:[%s230 + $0x150] sm:$0xff]
        %v447 = vld [vmem:[%s230 + $0x158] sm:$0xff]
        %v448 = vld [vmem:[%s230 + $0x160] sm:$0xff]
        %v449 = vld [vmem:[%s230 + $0x168] sm:$0xff]
        %v450 = vld [vmem:[%s230 + $0x170] sm:$0xff]
        %v451 = vld [vmem:[%s230 + $0x178] sm:$0xff]
        %v452 = vld [vmem:[%s230 + $0x180] sm:$0xff]
        %v453 = vld [vmem:[%s230 + $0x188] sm:$0xff]
        %v454 = vld [vmem:[%s230 + $0x190] sm:$0xff]
        %v455 = vld [vmem:[%s230 + $0x198] sm:$0xff]
        %v456 = vld [vmem:[%s230 + $0x1a0] sm:$0xff]
        %v457 = vld [vmem:[%s230 + $0x1a8] sm:$0xff]
        %v458 = vld [vmem:[%s230 + $0x1b0] sm:$0xff]
        %v459 = vld [vmem:[%s230 + $0x1b8] sm:$0xff]
        %v460 = vld [vmem:[%s230 + $0x1c0] sm:$0xff]
        %v461 = vld [vmem:[%s230 + $0x1c8] sm:$0xff]
        %v462 = vld [vmem:[%s230 + $0x1d0] sm:$0xff]
        %v463 = vld [vmem:[%s230 + $0x1d8] sm:$0xff]
        %v464 = vld [vmem:[%s230 + $0x1e0] sm:$0xff]
        %v465 = vld [vmem:[%s230 + $0x1e8] sm:$0xff]
        %v466 = vld [vmem:[%s230 + $0x1f0] sm:$0xff]
        %v467 = vld [vmem:[%s230 + $0x1f8] sm:$0xff]
        %468 = vmatprep.subr.mxu0 %v405
        %469 = vmatpush1.xpose.msra.mxu0 %v404
        %470 = vmatprep.subr.mxu0 %v407
        %471 = vmatpush1.xpose.msra.mxu0 %v406
        %472 = vmatprep.subr.mxu0 %v409
        %473 = vmatpush1.xpose.msra.mxu0 %v408
        %474 = vmatprep.subr.mxu0 %v411
        %475 = vmatpush1.xpose.msra.mxu0 %v410
        %476 = vmatprep.subr.mxu0 %v413
        %477 = vmatpush1.xpose.msra.mxu0 %v412
        %478 = vmatprep.subr.mxu0 %v415
        %479 = vmatpush1.xpose.msra.mxu0 %v414
        %480 = vmatprep.subr.mxu0 %v417
        %481 = vmatpush1.xpose.msra.mxu0 %v416
        %482 = vmatprep.subr.mxu0 %v419
        %483 = vmatpush1.xpose.msra.mxu0 %v418
        %484 = vmatprep.subr.mxu0 %v421
        %485 = vmatpush1.xpose.msra.mxu0 %v420
        %486 = vmatprep.subr.mxu0 %v423
        %487 = vmatpush1.xpose.msra.mxu0 %v422
        %488 = vmatprep.subr.mxu0 %v425
        %489 = vmatpush1.xpose.msra.mxu0 %v424
        %490 = vmatprep.subr.mxu0 %v427
        %491 = vmatpush1.xpose.msra.mxu0 %v426
        %492 = vmatprep.subr.mxu0 %v429
        %493 = vmatpush1.xpose.msra.mxu0 %v428
        %494 = vmatprep.subr.mxu0 %v431
        %495 = vmatpush1.xpose.msra.mxu0 %v430
        %496 = vmatprep.subr.mxu0 %v433
        %497 = vmatpush1.xpose.msra.mxu0 %v432
        %498 = vmatprep.subr.mxu0 %v435
        %499 = vmatpush1.xpose.msra.mxu0 %v434
        %500 = vmatprep.subr.mxu0 %v437
        %501 = vmatpush1.xpose.msra.mxu0 %v436
        %502 = vmatprep.subr.mxu0 %v439
        %503 = vmatpush1.xpose.msra.mxu0 %v438
        %504 = vmatprep.subr.mxu0 %v441
        %505 = vmatpush1.xpose.msra.mxu0 %v440
        %506 = vmatprep.subr.mxu0 %v443
        %507 = vmatpush1.xpose.msra.mxu0 %v442
        %508 = vmatprep.subr.mxu0 %v445
        %509 = vmatpush1.xpose.msra.mxu0 %v444
        %510 = vmatprep.subr.mxu0 %v447
        %511 = vmatpush1.xpose.msra.mxu0 %v446
        %512 = vmatprep.subr.mxu0 %v449
        %513 = vmatpush1.xpose.msra.mxu0 %v448
        %514 = vmatprep.subr.mxu0 %v451
        %515 = vmatpush1.xpose.msra.mxu0 %v450
        %516 = vmatprep.subr.mxu0 %v453
        %517 = vmatpush1.xpose.msra.mxu0 %v452
        %518 = vmatprep.subr.mxu0 %v455
        %519 = vmatpush1.xpose.msra.mxu0 %v454
        %520 = vmatprep.subr.mxu0 %v457
        %521 = vmatpush1.xpose.msra.mxu0 %v456
        %522 = vmatprep.subr.mxu0 %v459
        %523 = vmatpush1.xpose.msra.mxu0 %v458
        %524 = vmatprep.subr.mxu0 %v461
        %525 = vmatpush1.xpose.msra.mxu0 %v460
        %526 = vmatprep.subr.mxu0 %v463
        %527 = vmatpush1.xpose.msra.mxu0 %v462
        %528 = vmatprep.subr.mxu0 %v465
        %529 = vmatpush1.xpose.msra.mxu0 %v464
        %530 = vmatprep.subr.mxu0 %v467
        %531 = vmatpush1.xpose.msra.mxu0 %v466
        %532 = vmatprep.mubr.f32.mxu0 %v376
        %533 = vmatmul.mubr.f32.gmra.mrb[0].mxu0 %v374
        %v534 = vpop.f32.mrb[0].mxu0
        %v535 = vadd.f32 0.0, %v534
        %v536 = vpop.f32.mrb[0].mxu0
        %v537 = vadd.f32 0.0, %v536
        %538 = vmatprep.mubr.f32.mxu0 %v382
        %539 = vmatmul.mubr.f32.gmra.mrb[0].mxu0 %v380
        %v540 = vpop.f32.mrb[0].mxu0
        %v541 = vadd.f32 0.0, %v540
        %v542 = vpop.f32.mrb[0].mxu0
        %v543 = vadd.f32 0.0, %v542
        %544 = vmatprep.mubr.f32.mxu0 %v388
        %545 = vmatmul.mubr.f32.gmra.mrb[0].mxu0 %v386
        %v546 = vpop.f32.mrb[0].mxu0
        %v547 = vadd.f32 0.0, %v546
        %v548 = vpop.f32.mrb[0].mxu0
        %v549 = vadd.f32 0.0, %v548
        %550 = vmatprep.mubr.f32.mxu0 %v394
        %551 = vmatmul.mubr.f32.gmra.mrb[0].mxu0 %v392
        %v552 = vpop.f32.mrb[0].mxu0
        %v553 = vadd.f32 0.0, %v552
        %v554 = vpop.f32.mrb[0].mxu0
        %v555 = vadd.f32 0.0, %v554
        %556 = vdwg.mxu0
        %v557 = vadd.f32 %v396, %v535
        %v558 = vadd.f32 %v397, %v537
        %v559 = vadd.f32 %v398, %v541
        %v560 = vadd.f32 %v399, %v543
        %v561 = vadd.f32 %v400, %v547
        %v562 = vadd.f32 %v401, %v549
        %v563 = vadd.f32 %v402, %v553
        %v564 = vadd.f32 %v403, %v555
        %565 = vst [vmem:[#allocation2] sm:$0xff] %v557
        %566 = vst [vmem:[#allocation2 + $0x8] sm:$0xff] %v558
        %567 = vst [vmem:[#allocation2 + $0x10] sm:$0xff] %v559
        %568 = vst [vmem:[#allocation2 + $0x18] sm:$0xff] %v560
        %569 = vst [vmem:[#allocation2 + $0x20] sm:$0xff] %v561
        %570 = vst [vmem:[#allocation2 + $0x28] sm:$0xff] %v562
        %571 = vst [vmem:[#allocation2 + $0x30] sm:$0xff] %v563
        %572 = vst [vmem:[#allocation2 + $0x38] sm:$0xff] %v564
        %p573 = scmp.eq.s32.totalorder %s26, 1
        // Predicated region
        $region49: #{tpu_custom_call.1} parent=31 // pred_check
          %p574 = pneg %p573
        $region50: #{tpu_custom_call.1} parent=31 // pred_check_branch
          %576 = sbr.rel (%p574) target = $region52
        $region51: #{tpu_custom_call.1} parent=31 // pred_region
          %v577 = vld [vmem:[#allocation2] sm:$0xff]
          %v578 = vld [vmem:[#allocation2 + $0x8] sm:$0xff]
          %v579 = vld [vmem:[#allocation2 + $0x10] sm:$0xff]
          %v580 = vld [vmem:[#allocation2 + $0x18] sm:$0xff]
          %v581 = vld [vmem:[#allocation2 + $0x20] sm:$0xff]
          %v582 = vld [vmem:[#allocation2 + $0x28] sm:$0xff]
          %v583 = vld [vmem:[#allocation2 + $0x30] sm:$0xff]
          %v584 = vld [vmem:[#allocation2 + $0x38] sm:$0xff]
          %v585 = vmax.f32 %v577, 0.0
          %v586 = vmax.f32 %v578, 0.0
          %v587 = vmax.f32 %v579, 0.0
          %v588 = vmax.f32 %v580, 0.0
          %v589 = vmax.f32 %v581, 0.0
          %v590 = vmax.f32 %v582, 0.0
          %v591 = vmax.f32 %v583, 0.0
          %v592 = vmax.f32 %v584, 0.0
          %593 = vst [vmem:[%s257] sm:$0xff] %v585
          %594 = vst [vmem:[%s257 + $0x8] sm:$0xff] %v586
          %595 = vst [vmem:[%s257 + $0x10] sm:$0xff] %v587
          %596 = vst [vmem:[%s257 + $0x18] sm:$0xff] %v588
          %597 = vst [vmem:[%s257 + $0x20] sm:$0xff] %v589
          %598 = vst [vmem:[%s257 + $0x28] sm:$0xff] %v590
          %599 = vst [vmem:[%s257 + $0x30] sm:$0xff] %v591
          %600 = vst [vmem:[%s257 + $0x38] sm:$0xff] %v592
        $region52: #{tpu_custom_call.1} parent=31 // pred_fallthru
          _
        %s601 = sand.u32 %s116, 1
        %s602 = scalar_lea.sflag [#allocation5], %s601
        %s603 = sand.u32 %s116, 1
        %s604 = smul.addr %s603, 64
        %s605 = scalar_lea.vmem [#allocation9], %s604
        // Predicated region
        $region53: #{tpu_custom_call.1} parent=31 // pred_check
          %p606 = pneg %p126
        $region54: #{tpu_custom_call.1} parent=31 // pred_check_branch
          %608 = sbr.rel (%p606) target = $region56
        $region55: #{tpu_custom_call.1} parent=31 // pred_region
          %s609 = smul.u32 2, %s25
          %s611 = ssub.s32 1024, 1024
          %612 = vsyncadd %s602, %s611
          %s613 = smul.addr %s609, 128
          %s614 = scalar_lea.hbm %s3, %s613
          %s615 = sshll.u32 %s605, 4
          %s616 = int_to_ptr.vmem [resolvable:$true] %s615
          %621 = dma.vmem_to_hbm [thread:$0]  %s616, 1024, %s614, %s602, 256, 512, 16
        $region56: #{tpu_custom_call.1} parent=31 // pred_fallthru
          _
      $region32: #{tpu_custom_call.1} parent=5 // pred_fallthru
        _
      %p622 = scmp.le.s32.totalorder 2, %s16
      // Predicated region
      $region57: #{tpu_custom_call.1} parent=5 // pred_check
        %p623 = pneg %p622
      $region58: #{tpu_custom_call.1} parent=5 // pred_check_branch
        %625 = sbr.rel (%p623) target = $region60
      $region59: #{tpu_custom_call.1} parent=5 // pred_region
        %s626 = ssub.s32 %s16, 2
        // Predicated region
        $region61: #{tpu_custom_call.1} parent=59 // pred_check
          %p627 = pneg %p132
        $region62: #{tpu_custom_call.1} parent=59 // pred_check_branch
          %629 = sbr.rel (%p627) target = $region64
        $region63: #{tpu_custom_call.1} parent=59 // pred_region
          %s630 = sand.u32 %s117, 1
          %s631 = scalar_lea.sflag [#allocation5], %s630
          %s632 = sand.u32 %s117, 1
          %s633 = smul.addr %s632, 64
          %s634 = scalar_lea.vmem [#allocation9], %s633
          %635 = dma.done %s631, 1024
        $region64: #{tpu_custom_call.1} parent=59 // pred_fallthru
          _
      $region60: #{tpu_custom_call.1} parent=5 // pred_fallthru
        _
    $region6: #{tpu_custom_call.1} parent=1 // loop_footer
      %s20 = sadd.s32 1, %s16
    $region7: #{tpu_custom_call.1} parent=1 // loop_footer_branch
      %15 = sbr.rel target = $region3
    $region8: #{tpu_custom_call.1} parent=1 // loop_exit
      _
    %636 = vsyncpa [#allocation4], 1
    %s637 = scalar_lea.sflag [#allocation4], 1
    %638 = vsyncpa %s637, 1
    %639 = vsyncpa [#allocation7], 1
    %s640 = scalar_lea.sflag [#allocation7], 1
    %641 = vsyncpa %s640, 1
    %642 = vsyncpa [#allocation5], 1
    %s643 = scalar_lea.sflag [#allocation5], 1
    %644 = vsyncpa %s643, 1

</llo_original>
